<compile_context>
chip_gen: v7x
topology: tpu7x:2x2x1
jax: 0.10.0
libtpu: 0.0.40
codegen_flags: <defaults>
</compile_context>

<pallas_src>
import jax
import jax.numpy as jnp
from jax import lax
from jax.experimental import pallas as pl
from jax.experimental.pallas import tpu as pltpu

_LANE = 128
_MAX_BLOCK_ROWS = 4096   # (4096, 128) f32 tile = 2 MiB / input / pipeline buffer


def _cdiv(a, b):
    return -(-a // b)


def _make_kernel(n_preds, block_rows, n_blocks, tail_rows):
    """Kernel accumulating sum|x_p - y| and sum (x_p - y)^2 for each prediction.

    Output ref is (2*n_preds, 128): row 2p = per-lane L1 partials of pred p,
    row 2p+1 = per-lane L2 partials.  It stays VMEM-resident across the
    "arbitrary" reduction grid axis (same block index every step).
    """
    has_tail = tail_rows != block_rows   # ragged last block?

    def _accumulate(out_ref, y, x_refs, valid):
        parts = []
        for p in range(n_preds):
            x = x_refs[p][...].astype(jnp.float32)
            d = x - y
            if valid is not None:
                # True select: garbage OOB tail data must not reach the sums.
                d = jnp.where(valid, d, 0.0)
            # Lane-wise partials (block_rows,128)->(1,128); VPU adds only,
            # no cross-lane reduce and no scalar store per step.
            parts.append(jnp.sum(jnp.abs(d), axis=0, keepdims=True))
            parts.append(jnp.sum(d * d, axis=0, keepdims=True))
        out_ref[...] += jnp.concatenate(parts, axis=0)

    def kernel(*refs):
        y_ref = refs[0]
        x_refs = refs[1:1 + n_preds]
        out_ref = refs[1 + n_preds]

        i = pl.program_id(0)   # row-block index ("arbitrary" reduction axis)

        @pl.when(i == 0)
        def _init():
            out_ref[...] = jnp.zeros_like(out_ref)

        y = y_ref[...].astype(jnp.float32)

        if not has_tail:
            _accumulate(out_ref, y, x_refs, None)
        else:
            @pl.when(i < n_blocks - 1)
            def _full_block():
                _accumulate(out_ref, y, x_refs, None)

            @pl.when(i == n_blocks - 1)
            def _tail_block():
                row_ids = lax.broadcasted_iota(jnp.int32, (block_rows, _LANE), 0)
                _accumulate(out_ref, y, x_refs, row_ids < tail_rows)

    return kernel


@jax.jit
def _fused_l1_l2(y, xs):
    """For each x in xs (same shape as y) returns (mean|x-y|, mean (x-y)^2).

    All reductions against `y` run in a single pallas_call that streams `y`
    from HBM exactly once.
    """
    n_preds = len(xs)
    n = y.size
    n_main = (n // _LANE) * _LANE      # 128-aligned prefix handled by the kernel
    rem = n - n_main                   # <128-element ragged remainder (JAX epilogue)

    sums = jnp.zeros((2 * n_preds,), jnp.float32)

    if n_main:
        def main2d(a):
            flat = a.reshape(-1)
            if rem:
                flat = flat[:n_main]
            return flat.reshape(-1, _LANE)

        y2 = main2d(y)
        x2s = [main2d(x) for x in xs]

        total_rows = n_main // _LANE
        block_rows = min(total_rows, _MAX_BLOCK_ROWS)
        n_blocks = _cdiv(total_rows, block_rows)
        tail_rows = total_rows - (n_blocks - 1) * block_rows

        in_spec = pl.BlockSpec((block_rows, _LANE), lambda i: (i, 0))
        out_spec = pl.BlockSpec((2 * n_preds, _LANE), lambda i: (0, 0))

        partial = pl.pallas_call(
            _make_kernel(n_preds, block_rows, n_blocks, tail_rows),
            out_shape=jax.ShapeDtypeStruct((2 * n_preds, _LANE), jnp.float32),
            grid_spec=pltpu.PrefetchScalarGridSpec(
                num_scalar_prefetch=0,
                grid=(n_blocks,),
                in_specs=[in_spec] * (1 + n_preds),
                out_specs=out_spec,
            ),
            compiler_params=pltpu.CompilerParams(
                dimension_semantics=("arbitrary",),
            ),
        )(y2, *x2s)

        sums = sums + jnp.sum(partial, axis=1)

    if rem:
        # <128-element remainder: negligible plain-JAX epilogue (no jnp.pad copy).
        y_t = y.reshape(-1)[n_main:].astype(jnp.float32)
        tail_parts = []
        for x in xs:
            d = x.reshape(-1)[n_main:].astype(jnp.float32) - y_t
            tail_parts.append(jnp.sum(jnp.abs(d)))
            tail_parts.append(jnp.sum(d * d))
        sums = sums + jnp.stack(tail_parts)

    inv_n = 1.0 / float(n)
    return tuple(
        (sums[2 * p] * inv_n, sums[2 * p + 1] * inv_n) for p in range(n_preds)
    )


class CycleLossPallas:
    """JAX/Pallas re-implementation of CycleLoss.forward."""

    _NAMES = ["g1v", "g2v", "g1s", "g2s", "c1v", "c2v", "c1s", "c2s"]

    def __init__(self, **lambdas):
        # The PyTorch module reads lambdas from `args`; default them to 1.0.
        for nme in self._NAMES:
            setattr(self, "lambda_" + nme, float(lambdas.get("lambda_" + nme, 1.0)))
        self.loss_names = ["loss_" + nme for nme in self._NAMES]

    def __call__(self, data, label, pred_s=None, pred_v=None,
                 recon_s=None, recon_v=None):
        zero = jnp.float32(0.0)
        loss_g1v = loss_g2v = loss_g1s = loss_g2s = zero
        loss_c1v = loss_c2v = loss_c1s = loss_c2s = zero

        # Velocity side: predictions compared against `label` (read once).
        v_preds, v_slots = [], []
        if pred_v is not None:
            v_preds.append(pred_v); v_slots.append("g")
        if recon_v is not None:
            v_preds.append(recon_v); v_slots.append("c")
        if v_preds:
            for slot, (l1, l2) in zip(v_slots, _fused_l1_l2(label, tuple(v_preds))):
                if slot == "g":
                    loss_g1v, loss_g2v = l1, l2
                else:
                    loss_c1v, loss_c2v = l1, l2

        # Seismic side: predictions compared against `data` (read once).
        s_preds, s_slots = [], []
        if pred_s is not None:
            s_preds.append(pred_s); s_slots.append("g")
        if recon_s is not None:
            s_preds.append(recon_s); s_slots.append("c")
        if s_preds:
            for slot, (l1, l2) in zip(s_slots, _fused_l1_l2(data, tuple(s_preds))):
                if slot == "g":
                    loss_g1s, loss_g2s = l1, l2
                else:
                    loss_c1s, loss_c2s = l1, l2

        loss = (loss_g1v * self.lambda_g1v + loss_g2v * self.lambda_g2v
                + loss_g1s * self.lambda_g1s + loss_g2s * self.lambda_g2s
                + loss_c1v * self.lambda_c1v + loss_c2v * self.lambda_c2v
                + loss_c1s * self.lambda_c1s + loss_c2s * self.lambda_c2s)

        loss_dict = {
            "loss_g1v": loss_g1v, "loss_g2v": loss_g2v,
            "loss_g1s": loss_g1s, "loss_g2s": loss_g2s,
            "loss_c1v": loss_c1v, "loss_c2v": loss_c2v,
            "loss_c1s": loss_c1s, "loss_c2s": loss_c2s,
        }
        return loss, loss_dict


if __name__ == "__main__":
    key = jax.random.PRNGKey(0)
    k = jax.random.split(key, 12)

    # data/pred_s/recon_s: seismic-like NCHW [2, 4, 16, 16]
    # label/pred_v/recon_v: velocity-like NCHW [2, 4, 16, 16]
    data    = jax.random.normal(k[0], (2, 4, 16, 16), jnp.float32)
    label   = jax.random.normal(k[1], (2, 4, 16, 16), jnp.float32)
    pred_s  = jax.random.normal(k[2], (2, 4, 16, 16), jnp.float32)
    pred_v  = jax.random.normal(k[3], (2, 4, 16, 16), jnp.float32)
    recon_s = jax.random.normal(k[4], (2, 4, 16, 16), jnp.float32)
    recon_v = jax.random.normal(k[5], (2, 4, 16, 16), jnp.float32)

    crit = CycleLossPallas(
        lambda_g1v=1.0, lambda_g2v=0.5, lambda_g1s=1.0, lambda_g2s=0.5,
        lambda_c1v=0.25, lambda_c2v=0.25, lambda_c1s=0.25, lambda_c2s=0.25,
    )

    loss, loss_dict = crit(data, label, pred_s=pred_s, pred_v=pred_v,
                           recon_s=recon_s, recon_v=recon_v)
    loss = jax.block_until_ready(loss)
    for v in loss_dict.values():
        jax.block_until_ready(v)

    # --- reference check (plain JAX) -------------------------------------
    def ref_pair(x, y):
        return jnp.mean(jnp.abs(x - y)), jnp.mean((x - y) ** 2)

    r_g1v, r_g2v = ref_pair(pred_v, label)
    r_g1s, r_g2s = ref_pair(pred_s, data)
    r_c1v, r_c2v = ref_pair(recon_v, label)
    r_c1s, r_c2s = ref_pair(recon_s, data)
    ref_loss = (r_g1v * 1.0 + r_g2v * 0.5 + r_g1s * 1.0 + r_g2s * 0.5
                + r_c1v * 0.25 + r_c2v * 0.25 + r_c1s * 0.25 + r_c2s * 0.25)

    assert jnp.allclose(loss, ref_loss, rtol=1e-5, atol=1e-5), (loss, ref_loss)
    refs = {"loss_g1v": r_g1v, "loss_g2v": r_g2v, "loss_g1s": r_g1s,
            "loss_g2s": r_g2s, "loss_c1v": r_c1v, "loss_c2v": r_c2v,
            "loss_c1s": r_c1s, "loss_c2s": r_c2s}
    for name, rv in refs.items():
        assert jnp.allclose(loss_dict[name], rv, rtol=1e-5, atol=1e-5), name

    # --- secondary check: numel % 128 != 0 (JAX tail epilogue path) -------
    yb = jax.random.normal(k[6], (3, 5, 350, 70), jnp.float32)   # 367500 elems
    x1 = jax.random.normal(k[7], (3, 5, 350, 70), jnp.float32)
    x2 = jax.random.normal(k[8], (3, 5, 350, 70), jnp.float32)
    (l1a, l2a), (l1b, l2b) = _fused_l1_l2(yb, (x1, x2))
    jax.block_until_ready(l1a)
    ra1, ra2 = ref_pair(x1, yb)
    rb1, rb2 = ref_pair(x2, yb)
    assert jnp.allclose(l1a, ra1, rtol=1e-5, atol=1e-5), (l1a, ra1)
    assert jnp.allclose(l2a, ra2, rtol=1e-5, atol=1e-5), (l2a, ra2)
    assert jnp.allclose(l1b, rb1, rtol=1e-5, atol=1e-5), (l1b, rb1)
    assert jnp.allclose(l2b, rb2, rtol=1e-5, atol=1e-5), (l2b, rb2)

    # --- tertiary check: multi-block grid + in-kernel ragged-tail mask ----
    yc = jax.random.normal(k[9],  (4231, 128), jnp.float32)   # 4231 rows -> 2 blocks
    xc = jax.random.normal(k[10], (4231, 128), jnp.float32)
    ((l1c, l2c),) = _fused_l1_l2(yc, (xc,))
    jax.block_until_ready(l1c)
    rc1, rc2 = ref_pair(xc, yc)
    assert jnp.allclose(l1c, rc1, rtol=1e-5, atol=1e-5), (l1c, rc1)
    assert jnp.allclose(l2c, rc2, rtol=1e-5, atol=1e-5), (l2c, rc2)

    print("KERNEL_OK")
</pallas_src>

<mosaic_0001>
module attributes {stable_mosaic.version = 11 : i64} {
  func.func @kernel(%arg0: i32, %arg1: memref<16x128xf32, #tpu.memory_space<vmem>>, %arg2: memref<16x128xf32, #tpu.memory_space<vmem>>, %arg3: memref<16x128xf32, #tpu.memory_space<vmem>>, %arg4: memref<4x128xf32, #tpu.memory_space<vmem>>) attributes {dimension_semantics = [#tpu.dimension_semantics<arbitrary>], iteration_bounds = array<i64: 1>, scalar_prefetch = 0 : i64, scratch_operands = 0 : i64, tpu.core_type = #tpu.core_type<tc>, window_params = [{transform_indices = @transform_0, window_bounds = array<i64: 16, 128>}, {transform_indices = @transform_1, window_bounds = array<i64: 16, 128>}, {transform_indices = @transform_2, window_bounds = array<i64: 16, 128>}, {pipeline_mode = #tpu.pipeline_mode<synchronous>, transform_indices = @transform_3, window_bounds = array<i64: 4, 128>}]} {
    %c0_i32 = arith.constant 0 : i32
    %0 = arith.cmpi eq, %arg0, %c0_i32 : i32
    %1 = arith.extui %0 : i1 to i32
    %c0_i32_0 = arith.constant 0 : i32
    %2 = arith.cmpi ne, %1, %c0_i32_0 : i32
    scf.if %2 {
      %cst_13 = arith.constant 0.000000e+00 : f32
      %24 = vector.broadcast %cst_13 : f32 to vector<4x128xf32>
      %c0_14 = arith.constant 0 : index
      %c0_15 = arith.constant 0 : index
      %25 = vector.load %arg4[%c0_14, %c0_15] : memref<4x128xf32, #tpu.memory_space<vmem>>, vector<4x128xf32>
      tpu.vector_store %arg4[%c0_14, %c0_15], %24 {strides = array<i32>} : memref<4x128xf32, #tpu.memory_space<vmem>>, vector<4x128xf32>,
    } else {
    }
    %c0 = arith.constant 0 : index
    %c0_1 = arith.constant 0 : index
    %3 = vector.load %arg1[%c0, %c0_1] : memref<16x128xf32, #tpu.memory_space<vmem>>, vector<16x128xf32>
    %c0_2 = arith.constant 0 : index
    %c0_3 = arith.constant 0 : index
    %4 = vector.load %arg2[%c0_2, %c0_3] : memref<16x128xf32, #tpu.memory_space<vmem>>, vector<16x128xf32>
    %5 = arith.subf %4, %3 : vector<16x128xf32>
    %6 = math.absf %5 : vector<16x128xf32>
    %cst = arith.constant dense<0.000000e+00> : vector<128xf32>
    %7 = vector.multi_reduction <add>, %6, %cst [0] : vector<16x128xf32> to vector<128xf32>
    %8 = vector.shape_cast %7 : vector<128xf32> to vector<1x128xf32>
    %9 = arith.mulf %5, %5 : vector<16x128xf32>
    %cst_4 = arith.constant dense<0.000000e+00> : vector<128xf32>
    %10 = vector.multi_reduction <add>, %9, %cst_4 [0] : vector<16x128xf32> to vector<128xf32>
    %11 = vector.shape_cast %10 : vector<128xf32> to vector<1x128xf32>
    %c0_5 = arith.constant 0 : index
    %c0_6 = arith.constant 0 : index
    %12 = vector.load %arg3[%c0_5, %c0_6] : memref<16x128xf32, #tpu.memory_space<vmem>>, vector<16x128xf32>
    %13 = arith.subf %12, %3 : vector<16x128xf32>
    %14 = math.absf %13 : vector<16x128xf32>
    %cst_7 = arith.constant dense<0.000000e+00> : vector<128xf32>
    %15 = vector.multi_reduction <add>, %14, %cst_7 [0] : vector<16x128xf32> to vector<128xf32>
    %16 = vector.shape_cast %15 : vector<128xf32> to vector<1x128xf32>
    %17 = arith.mulf %13, %13 : vector<16x128xf32>
    %cst_8 = arith.constant dense<0.000000e+00> : vector<128xf32>
    %18 = vector.multi_reduction <add>, %17, %cst_8 [0] : vector<16x128xf32> to vector<128xf32>
    %19 = vector.shape_cast %18 : vector<128xf32> to vector<1x128xf32>
    %c0_9 = arith.constant 0 : index
    %c0_10 = arith.constant 0 : index
    %20 = vector.load %arg4[%c0_9, %c0_10] : memref<4x128xf32, #tpu.memory_space<vmem>>, vector<4x128xf32>
    %21 = tpu.concatenate %8, %11, %16, %19 in 0 : vector<1x128xf32>, vector<1x128xf32>, vector<1x128xf32>, vector<1x128xf32> -> vector<4x128xf32>
    %22 = arith.addf %20, %21 : vector<4x128xf32>
    %c0_11 = arith.constant 0 : index
    %c0_12 = arith.constant 0 : index
    %23 = vector.load %arg4[%c0_11, %c0_12] : memref<4x128xf32, #tpu.memory_space<vmem>>, vector<4x128xf32>
    tpu.vector_store %arg4[%c0_11, %c0_12], %22 {strides = array<i32>} : memref<4x128xf32, #tpu.memory_space<vmem>>, vector<4x128xf32>,
    return
  }
  func.func @transform_0(%arg0: i32) -> (i32, i32) {
    %c0_i32 = arith.constant 0 : i32
    %c0_i32_0 = arith.constant 0 : i32
    return %arg0, %c0_i32 : i32, i32
  }
  func.func @transform_1(%arg0: i32) -> (i32, i32) {
    %c0_i32 = arith.constant 0 : i32
    %c0_i32_0 = arith.constant 0 : i32
    return %arg0, %c0_i32 : i32, i32
  }
  func.func @transform_2(%arg0: i32) -> (i32, i32) {
    %c0_i32 = arith.constant 0 : i32
    %c0_i32_0 = arith.constant 0 : i32
    return %arg0, %c0_i32 : i32, i32
  }
  func.func @transform_3(%arg0: i32) -> (i32, i32) {
    %c0_i32 = arith.constant 0 : i32
    %c0_i32_0 = arith.constant 0 : i32
    %c0_i32_1 = arith.constant 0 : i32
    return %c0_i32, %c0_i32_0 : i32, i32
  }
}

</mosaic_0001>

<llo_original>
// kernel: _fused_l1_l2.1
$region0: #{_fused_l1_l2.1}
  #allocation0 [shape = 'u32[]', space=smem, size = 0x4, offset = 0x4, fixed_abs, tag = 'smem constant byte address 0x4 - core index']
  #allocation1 [shape = 'u32[144,128]{1,0:T(1,128)}', space=vmem, size = 0x12000, scoped, tag = 'internal scratch']
  %s0 = inlined_call_operand.vmem [shape: f32[16,128], index: 0, kind: input, shape index: {}]
  %s1 = inlined_call_operand.vmem [shape: f32[16,128], index: 1, kind: input, shape index: {}]
  %s2 = inlined_call_operand.vmem [shape: f32[16,128], index: 2, kind: input, shape index: {}]
  %s3 = inlined_call_operand.vmem [shape: f32[4,128], index: 3, kind: output, shape index: {}]
  %s4 = sld [smem:[#allocation0]]
  $region26: #{_fused_l1_l2.1} parent=0
    _
  %s6 = ssub.s32 1, %s4
  %s7 = scalar_select 0, %s6, %s4
  // Predicated region
  $region2: #{_fused_l1_l2.1} parent=0 // pred_check
    _
  $region3: #{_fused_l1_l2.1} parent=0 // pred_check_branch
    %9 = sbr.rel (0) target = $region5
  $region4: #{_fused_l1_l2.1} parent=0 // pred_region
    _
  $region5: #{_fused_l1_l2.1} parent=0 // pred_fallthru
    _
  // Predicated region
  $region6: #{_fused_l1_l2.1} parent=0 // pred_check
    _
  $region7: #{_fused_l1_l2.1} parent=0 // pred_check_branch
    %11 = sbr.rel (0) target = $region9
  $region8: #{_fused_l1_l2.1} parent=0 // pred_region
    _
  $region9: #{_fused_l1_l2.1} parent=0 // pred_fallthru
    _
  // Predicated region
  $region10: #{_fused_l1_l2.1} parent=0 // pred_check
    _
  $region11: #{_fused_l1_l2.1} parent=0 // pred_check_branch
    %13 = sbr.rel (0) target = $region13
  $region12: #{_fused_l1_l2.1} parent=0 // pred_region
    _
  $region13: #{_fused_l1_l2.1} parent=0 // pred_fallthru
    _
  %p14 = scmp.eq.s32.totalorder 0, 0
  // Predicated region
  $region14: #{_fused_l1_l2.1} parent=0 // pred_check
    %p15 = pneg %p14
  $region15: #{_fused_l1_l2.1} parent=0 // pred_check_branch
    %17 = sbr.rel (%p15) target = $region17
  $region16: #{_fused_l1_l2.1} parent=0 // pred_region
    %18 = vst [vmem:[%s3] sm:$0xf] 0.0
  $region17: #{_fused_l1_l2.1} parent=0 // pred_fallthru
    _
  %v19 = vld [vmem:[%s0] sm:$0xff]
  %v20 = vld [vmem:[%s0 + $0x8] sm:$0xff]
  %v21 = vld [vmem:[%s1] sm:$0xff]
  %v22 = vld [vmem:[%s1 + $0x8] sm:$0xff]
  %v23 = vsub.f32 %v21, %v19
  %v24 = vsub.f32 %v22, %v20
  %v25 = vand.u32 2147483647, %v23
  %v26 = vand.u32 2147483647, %v24
  %v27 = vadd.f32 %v25, %v26
  %v28 = vrot.slane %v27, 4
  %v29 = vadd.f32 %v27, %v28
  %v30 = vrot.slane %v29, 2
  %v31 = vadd.f32 %v29, %v30
  %v32 = vrot.slane %v31, 1
  %v33 = vadd.f32 %v31, %v32
  %v34 = vmul.f32 %v23, %v23
  %v35 = vmul.f32 %v24, %v24
  %v36 = vadd.f32 %v34, %v35
  %v37 = vrot.slane %v36, 4
  %v38 = vadd.f32 %v36, %v37
  %v39 = vrot.slane %v38, 2
  %v40 = vadd.f32 %v38, %v39
  %v41 = vrot.slane %v40, 1
  %v42 = vadd.f32 %v40, %v41
  %v43 = vld [vmem:[%s2] sm:$0xff]
  %v44 = vld [vmem:[%s2 + $0x8] sm:$0xff]
  %v45 = vsub.f32 %v43, %v19
  %v46 = vsub.f32 %v44, %v20
  %v47 = vand.u32 2147483647, %v45
  %v48 = vand.u32 2147483647, %v46
  %v49 = vadd.f32 %v47, %v48
  %v50 = vrot.slane %v49, 4
  %v51 = vadd.f32 %v49, %v50
  %v52 = vrot.slane %v51, 2
  %v53 = vadd.f32 %v51, %v52
  %v54 = vrot.slane %v53, 1
  %v55 = vadd.f32 %v53, %v54
  %v56 = vmul.f32 %v45, %v45
  %v57 = vmul.f32 %v46, %v46
  %v58 = vadd.f32 %v56, %v57
  %v59 = vrot.slane %v58, 4
  %v60 = vadd.f32 %v58, %v59
  %v61 = vrot.slane %v60, 2
  %v62 = vadd.f32 %v60, %v61
  %v63 = vrot.slane %v62, 1
  %v64 = vadd.f32 %v62, %v63
  %v65 = vld [vmem:[%s3] sm:$0xf]
  %vm66 = vcmask 1040384
  %v67 = vsel %vm66, %v33, %v42
  %vm68 = vcmask 1041408
  %v69 = vsel %vm68, %v67, %v55
  %vm70 = vcmask 1042432
  %v71 = vsel %vm70, %v69, %v64
  %v72 = vadd.f32 %v65, %v71
  %73 = vst [vmem:[%s3] sm:$0xf] %v72
  // Predicated region
  $region18: #{_fused_l1_l2.1} parent=0 // pred_check
    _
  $region19: #{_fused_l1_l2.1} parent=0 // pred_check_branch
    %75 = sbr.rel (0) target = $region21
  $region20: #{_fused_l1_l2.1} parent=0 // pred_region
    _
  $region21: #{_fused_l1_l2.1} parent=0 // pred_fallthru
    _
  // Predicated region
  $region22: #{_fused_l1_l2.1} parent=0 // pred_check
    _
  $region23: #{_fused_l1_l2.1} parent=0 // pred_check_branch
    %77 = sbr.rel (0) target = $region25
  $region24: #{_fused_l1_l2.1} parent=0 // pred_region
    _
  $region25: #{_fused_l1_l2.1} parent=0 // pred_fallthru
    _

</llo_original>
